<compile_context>
chip_gen: v7x
topology: tpu7x:2x2x1
jax: 0.10.0
libtpu: 0.0.40
codegen_flags: <defaults>
</compile_context>

<pallas_src>
import jax
import jax.numpy as jnp
from jax.experimental import pallas as pl
from jax.experimental.pallas import tpu as pltpu


def _expand_kernel(x_ref, o_ref):
    # x_ref: (tile_rows, H)       -- lane axis = H (dense load)
    # o_ref: (E, tile_rows, H)    -- lane axis = H (dense, unmasked stores)
    x = x_ref[...]
    o_ref[...] = jnp.broadcast_to(x[None, ...], o_ref.shape)


def _pick_tile_rows(rows: int, h: int, itemsize: int,
                    budget_bytes: int = 8 << 20) -> int:
    # Per grid step we hold a double-buffered input tile (tile_rows * H) and a
    # double-buffered output tile (4 * tile_rows * H) in VMEM.
    per_row = 2 * 5 * h * itemsize
    max_rows = max(1, budget_bytes // per_row)
    if rows <= max_rows:
        return rows                      # one block spans the whole row axis
    return max(8, (max_rows // 8) * 8)   # keep the sublane dim a multiple of 8


def expand_last_dim(x: jax.Array, target_last: int = 4) -> jax.Array:
    """Pallas equivalent of torch `x.expand(-1, -1, -1, target_last)` for a
    rank-4 input whose last dim is 1."""
    assert x.ndim == 4 and x.shape[-1] == 1, "expects (B, C, H, 1) input"
    b, c, h, _ = x.shape
    rows = b * c
    x2 = x.reshape(rows, h)              # contiguous -> free reshape

    tile_rows = _pick_tile_rows(rows, h, x.dtype.itemsize)
    grid = (pl.cdiv(rows, tile_rows),)

    y = pl.pallas_call(
        _expand_kernel,
        out_shape=jax.ShapeDtypeStruct((target_last, rows, h), x.dtype),
        grid=grid,
        in_specs=[pl.BlockSpec((tile_rows, h), lambda i: (i, 0))],
        out_specs=pl.BlockSpec((target_last, tile_rows, h),
                               lambda i: (0, i, 0)),
        compiler_params=pltpu.CompilerParams(
            dimension_semantics=("parallel",),
            vmem_limit_bytes=32 * 1024 * 1024,
        ),
    )(x2)

    # (E, rows, H) -> (rows, H, E) -> (B, C, H, E); layout plumbing only.
    return jnp.transpose(y, (1, 2, 0)).reshape(b, c, h, target_last)


if __name__ == "__main__":
    key = jax.random.PRNGKey(0)
    # Small rank-4 float32 input with a broadcastable last dim of 1.
    x = jax.random.normal(key, (2, 4, 16, 1), dtype=jnp.float32)

    out = expand_last_dim(x, 4)
    out = jax.block_until_ready(out)

    # Reference check against plain JAX broadcasting (== torch expand semantics).
    ref = jnp.broadcast_to(x, (2, 4, 16, 4))
    assert out.shape == (2, 4, 16, 4)
    assert out.dtype == jnp.float32
    assert jnp.array_equal(out, ref)

    print("KERNEL_OK")
</pallas_src>

<mosaic_0001>
module attributes {stable_mosaic.version = 11 : i64} {
  func.func @_expand_kernel(%arg0: i32, %arg1: memref<8x16xf32, #tpu.memory_space<vmem>>, %arg2: memref<4x8x16xf32, #tpu.memory_space<vmem>>) attributes {dimension_semantics = [#tpu.dimension_semantics<parallel>], iteration_bounds = array<i64: 1>, scalar_prefetch = 0 : i64, scratch_operands = 0 : i64, tpu.core_type = #tpu.core_type<tc>, window_params = [{transform_indices = @transform_0, window_bounds = array<i64: 8, 16>}, {transform_indices = @transform_1, window_bounds = array<i64: 4, 8, 16>}]} {
    %c0 = arith.constant 0 : index
    %c0_0 = arith.constant 0 : index
    %0 = vector.load %arg1[%c0, %c0_0] : memref<8x16xf32, #tpu.memory_space<vmem>>, vector<8x16xf32>
    %1 = vector.shape_cast %0 : vector<8x16xf32> to vector<1x8x16xf32>
    %2 = vector.shape_cast %1 : vector<1x8x16xf32> to vector<1x8x16xf32>
    %3 = vector.broadcast %2 : vector<1x8x16xf32> to vector<4x8x16xf32>
    %c0_1 = arith.constant 0 : index
    %c0_2 = arith.constant 0 : index
    %c0_3 = arith.constant 0 : index
    %4 = vector.load %arg2[%c0_1, %c0_2, %c0_3] : memref<4x8x16xf32, #tpu.memory_space<vmem>>, vector<4x8x16xf32>
    tpu.vector_store %arg2[%c0_1, %c0_2, %c0_3], %3 {strides = array<i32>} : memref<4x8x16xf32, #tpu.memory_space<vmem>>, vector<4x8x16xf32>,
    return
  }
  func.func @transform_0(%arg0: i32) -> (i32, i32) {
    %c0_i32 = arith.constant 0 : i32
    %c0_i32_0 = arith.constant 0 : i32
    return %arg0, %c0_i32 : i32, i32
  }
  func.func @transform_1(%arg0: i32) -> (i32, i32, i32) {
    %c0_i32 = arith.constant 0 : i32
    %c0_i32_0 = arith.constant 0 : i32
    %c0_i32_1 = arith.constant 0 : i32
    return %c0_i32, %arg0, %c0_i32_0 : i32, i32, i32
  }
}

</mosaic_0001>

<llo_original>
// kernel: tpu_custom_call.1
$region0: #{tpu_custom_call.1}
  #allocation0 [shape = 'u32[]', space=smem, size = 0x4, offset = 0x4, fixed_abs, tag = 'smem constant byte address 0x4 - core index']
  #allocation1 [shape = 'u32[144,128]{1,0:T(1,128)}', space=vmem, size = 0x12000, scoped, tag = 'internal scratch']
  %s0 = inlined_call_operand.hbm [shape: f32[8,16], index: 0, kind: input, shape index: {}]
  %s1 = inlined_call_operand.hbm [shape: f32[4,8,16], index: 1, kind: output, shape index: {}]
  %s2 = sld [smem:[#allocation0]]
  $region18: #{tpu_custom_call.1} parent=0
    _
  %s4 = ssub.s32 1, %s2
  %s5 = scalar_select 0, %s4, %s2
  $region1: #{tpu_custom_call.1} parent=0
    #allocation2 [shape = 'u8[4096]{0}', space=vmem, size = 0x1000, scoped, tag = 'input window, operand 0, single buffered']
    #allocation3 [shape = 's32[1]{0}', space=sflag, size = 0x4, scoped, tag = 'scoped memory for tpu_custom_call.1']
    #allocation4 [shape = 's32[1]{0}', space=sflag, size = 0x4, scoped, tag = 'scoped memory for tpu_custom_call.1']
    #allocation5 [shape = 'u8[16384]{0}', space=vmem, size = 0x4000, scoped, tag = 'output window, operand 0, single buffered']
    %6 = vsyncpa [#allocation3], 0
    %7 = vsyncpa [#allocation4], 0
    // Predicated region
    $region2: #{tpu_custom_call.1} parent=1 // pred_check
      _
    $region3: #{tpu_custom_call.1} parent=1 // pred_check_branch
      %9 = sbr.rel (0) target = $region5
    $region4: #{tpu_custom_call.1} parent=1 // pred_region
      %s11 = ssub.s32 128, 128
      %12 = vsyncadd [#allocation3], %s11
      %s14 = sshll.u32 [#allocation2], 4
      %s15 = int_to_ptr.vmem [resolvable:$true] %s14
      %17 = dma.hbm_to_vmem [thread:$0]  %s0, 128, %s15, [#allocation3]
    $region5: #{tpu_custom_call.1} parent=1 // pred_fallthru
      _
    // Predicated region
    $region6: #{tpu_custom_call.1} parent=1 // pred_check
      _
    $region7: #{tpu_custom_call.1} parent=1 // pred_check_branch
      %19 = sbr.rel (0) target = $region9
    $region8: #{tpu_custom_call.1} parent=1 // pred_region
      %20 = dma.done [#allocation3], 128
    $region9: #{tpu_custom_call.1} parent=1 // pred_fallthru
      _
    %v21 = vld [vmem:[#allocation2] sm:$0xff]
    %vm22 = vcmask 130048
    %23 = vst.msk [vmem:[#allocation5] sm:$0xff] %vm22, %v21
    %24 = vst.msk [vmem:[#allocation5 + $0x8] sm:$0xff] %vm22, %v21
    %25 = vst.msk [vmem:[#allocation5 + $0x10] sm:$0xff] %vm22, %v21
    %26 = vst.msk [vmem:[#allocation5 + $0x18] sm:$0xff] %vm22, %v21
    // Predicated region
    $region10: #{tpu_custom_call.1} parent=1 // pred_check
      _
    $region11: #{tpu_custom_call.1} parent=1 // pred_check_branch
      %28 = sbr.rel (0) target = $region13
    $region12: #{tpu_custom_call.1} parent=1 // pred_region
      %s30 = ssub.s32 512, 512
      %31 = vsyncadd [#allocation4], %s30
      %s32 = sshll.u32 [#allocation5], 4
      %s33 = int_to_ptr.vmem [resolvable:$true] %s32
      %38 = dma.vmem_to_hbm [thread:$0]  %s33, 512, %s1, [#allocation4], 128, 128, 8
    $region13: #{tpu_custom_call.1} parent=1 // pred_fallthru
      _
    // Predicated region
    $region14: #{tpu_custom_call.1} parent=1 // pred_check
      _
    $region15: #{tpu_custom_call.1} parent=1 // pred_check_branch
      %40 = sbr.rel (0) target = $region17
    $region16: #{tpu_custom_call.1} parent=1 // pred_region
      %41 = dma.done [#allocation4], 512
    $region17: #{tpu_custom_call.1} parent=1 // pred_fallthru
      _
    %42 = vsyncpa [#allocation3], 1
    %43 = vsyncpa [#allocation4], 1

</llo_original>
